<compile_context>
chip_gen: v7x
topology: tpu7x:2x2x1
jax: 0.10.0
libtpu: 0.0.40
codegen_flags: <defaults>
</compile_context>

<pallas_src>
import jax
import jax.numpy as jnp
from jax.experimental import pallas as pl
from jax.experimental.pallas import tpu as pltpu


def _partial_conv_kernel(x_ref, w_ref, ms_ref, b_ref, out_ref, mout_ref):
    # Conv-as-matmul on the MXU: [C_out, K] bf16 @ [K, tm] bf16 -> [C_out, tm] f32.
    res = jnp.dot(w_ref[...], x_ref[...], preferred_element_type=jnp.float32)

    # Window-sum of the mask (the ones-weight mask_update conv), f32, shape [1, tm].
    msum = ms_ref[...]
    nonzero = msum != 0.0
    # mask[mask != 0] = 1 / mask  -> renormalization factor (EUP reciprocal).
    inv = jnp.where(nonzero, pl.reciprocal(msum), 0.0)
    # result = (conv(image*mask) * inv + bias) * binary_mask   (holes -> 0)
    out = jnp.where(nonzero, res * inv + b_ref[...], 0.0)

    out_ref[...] = out.astype(out_ref.dtype)        # [C_out, tm] lane-dense store
    mout_ref[...] = nonzero.astype(mout_ref.dtype)  # [1, tm]    lane-dense store


def _im2col_t(x, kh, kw, stride):
    """x: [N, C, H, W] -> patches [C*kh*kw, N*Ho*Wo] (feature order = (C, kh, kw))."""
    N, C, H, W = x.shape
    Ho = (H - kh) // stride + 1
    Wo = (W - kw) // stride + 1
    cols = []
    for i in range(kh):
        for j in range(kw):
            cols.append(x[:, :, i:i + stride * Ho:stride, j:j + stride * Wo:stride])
    p = jnp.stack(cols, axis=2)                 # [N, C, kh*kw, Ho, Wo]
    p = p.transpose(1, 2, 0, 3, 4)              # [C, kh*kw, N, Ho, Wo]
    return p.reshape(C * kh * kw, N * Ho * Wo), Ho, Wo


def partial_conv(image, mask, weight, bias, stride, tm=512):
    """image: [N,C,H,W], mask: [N,1,H,W], weight: [C_out,C,kh,kw], bias: [C_out]."""
    assert tm % 128 == 0, "tm must be a multiple of the 128-lane vreg width"
    N, C, H, W = image.shape
    C_out, _, kh, kw = weight.shape

    # image * mask once, in NCHW, before im2col (drops the duplicated mask stream).
    masked = image * mask
    x_p, Ho, Wo = _im2col_t(masked, kh, kw, stride)             # [K, M] f32
    m_p, _, _ = _im2col_t(mask, kh, kw, stride)                 # [kh*kw, M] f32
    msum = jnp.sum(m_p, axis=0, keepdims=True)                  # [1, M] ones-conv

    M = N * Ho * Wo
    K = C * kh * kw

    # Pad the flattened spatial axis up to a multiple of tm (no shape assert).
    M_pad = pl.cdiv(M, tm) * tm
    if M_pad != M:
        x_p = jnp.pad(x_p, ((0, 0), (0, M_pad - M)))
        msum = jnp.pad(msum, ((0, 0), (0, M_pad - M)))

    # bf16 operands for the MXU; accumulation and the epilogue stay f32.
    x_p = x_p.astype(jnp.bfloat16)
    w2 = weight.reshape(C_out, K).astype(jnp.bfloat16)          # [C_out, K]
    b2 = bias.reshape(C_out, 1).astype(jnp.float32)             # [C_out, 1]
    msum = msum.astype(jnp.float32)

    cost = pl.CostEstimate(
        flops=2 * M_pad * K * C_out,
        transcendentals=M_pad,
        bytes_accessed=(x_p.size * 2 + w2.size * 2 + msum.size * 4 + b2.size * 4
                        + M_pad * C_out * 4 + M_pad * 4),
    )

    out, mout = pl.pallas_call(
        _partial_conv_kernel,
        out_shape=(jax.ShapeDtypeStruct((C_out, M_pad), jnp.float32),
                   jax.ShapeDtypeStruct((1, M_pad), jnp.float32)),
        grid_spec=pltpu.PrefetchScalarGridSpec(
            num_scalar_prefetch=0,
            grid=(M_pad // tm,),
            in_specs=[
                pl.BlockSpec((K, tm), lambda i: (0, i)),        # patches (streamed)
                pl.BlockSpec((C_out, K), lambda i: (0, 0)),     # weight (resident)
                pl.BlockSpec((1, tm), lambda i: (0, i)),        # mask window sums
                pl.BlockSpec((C_out, 1), lambda i: (0, 0)),     # bias (resident)
            ],
            out_specs=(
                pl.BlockSpec((C_out, tm), lambda i: (0, i)),
                pl.BlockSpec((1, tm), lambda i: (0, i)),
            ),
        ),
        compiler_params=pltpu.CompilerParams(
            dimension_semantics=("parallel",),
            vmem_limit_bytes=32 * 1024 * 1024,
        ),
        cost_estimate=cost,
    )(x_p, w2, msum, b2)

    result = out[:, :M].reshape(C_out, N, Ho, Wo).transpose(1, 0, 2, 3)   # NCHW
    mask_out = mout[:, :M].reshape(1, N, Ho, Wo).transpose(1, 0, 2, 3)    # NCHW
    return result, mask_out


def _reference(image, mask, weight, bias, stride, kh, kw, mxu_dtype=jnp.float32):
    """Pure-JAX reference of the PyTorch forward pass (NCHW)."""
    dn = ('NCHW', 'OIHW', 'NCHW')
    masked = (image * mask).astype(mxu_dtype)
    res = jax.lax.conv_general_dilated(
        masked, weight.astype(mxu_dtype), (stride, stride), 'VALID',
        dimension_numbers=dn, preferred_element_type=jnp.float32)
    ones_w = jnp.ones((1, 1, kh, kw), jnp.float32)
    msum = jax.lax.conv_general_dilated(mask, ones_w, (stride, stride), 'VALID',
                                        dimension_numbers=dn)
    nonzero = (msum != 0.0)
    inv = jnp.where(nonzero, 1.0 / msum, 0.0)
    binary = nonzero.astype(jnp.float32)
    out = (res * inv + bias.reshape(1, -1, 1, 1)) * binary
    return out, binary


if __name__ == "__main__":
    key = jax.random.PRNGKey(0)
    k1, k2, k3, k4 = jax.random.split(key, 4)

    N, C_in, C_out, H, W, KSZ, S = 2, 4, 8, 16, 16, 3, 1
    image = jax.random.normal(k1, (N, C_in, H, W), jnp.float32)
    mask = (jax.random.uniform(k2, (N, 1, H, W)) > 0.4).astype(jnp.float32)
    mask = mask.at[:, :, 0:6, 0:6].set(0.0)   # guarantee some fully-masked windows

    # Deterministic synthetic parameters (same shapes as nn.Conv2d in the module).
    weight = jax.random.normal(k3, (C_out, C_in, KSZ, KSZ), jnp.float32) * 0.1
    bias = jax.random.normal(k4, (C_out,), jnp.float32) * 0.1

    # Demo problem is tiny: tm=256 gives a 2-step parallel grid (keeps both v7x
    # TensorCores busy). Production shapes should use the default tm=512-2048.
    result, mask_out = partial_conv(image, mask, weight, bias, S, tm=256)
    jax.block_until_ready((result, mask_out))

    # Compare against a reference using the same bf16 MXU operand precision.
    ref_r, ref_m = _reference(image, mask, weight, bias, S, KSZ, KSZ,
                              mxu_dtype=jnp.bfloat16)
    assert jnp.allclose(result, ref_r, rtol=1e-3, atol=1e-3)
    assert jnp.allclose(mask_out, ref_m)

    print("KERNEL_OK")
</pallas_src>

<mosaic_0001>
module attributes {stable_mosaic.version = 11 : i64} {
  func.func @_partial_conv_kernel(%arg0: i32, %arg1: memref<36x256xbf16, #tpu.memory_space<vmem>>, %arg2: memref<8x36xbf16, #tpu.memory_space<vmem>>, %arg3: memref<1x256xf32, #tpu.memory_space<vmem>>, %arg4: memref<8x1xf32, #tpu.memory_space<vmem>>, %arg5: memref<8x256xf32, #tpu.memory_space<vmem>>, %arg6: memref<1x256xf32, #tpu.memory_space<vmem>>) attributes {dimension_semantics = [#tpu.dimension_semantics<parallel>], iteration_bounds = array<i64: 2>, scalar_prefetch = 0 : i64, scratch_operands = 0 : i64, tpu.core_type = #tpu.core_type<tc>, window_params = [{transform_indices = @transform_0, window_bounds = array<i64: 36, 256>}, {pipeline_mode = #tpu.pipeline_mode<synchronous>, transform_indices = @transform_1, window_bounds = array<i64: 8, 36>}, {transform_indices = @transform_2, window_bounds = array<i64: 1, 256>}, {pipeline_mode = #tpu.pipeline_mode<synchronous>, transform_indices = @transform_3, window_bounds = array<i64: 8, 1>}, {transform_indices = @transform_4, window_bounds = array<i64: 8, 256>}, {transform_indices = @transform_5, window_bounds = array<i64: 1, 256>}]} {
    %c0 = arith.constant 0 : index
    %c0_0 = arith.constant 0 : index
    %0 = vector.load %arg2[%c0, %c0_0] : memref<8x36xbf16, #tpu.memory_space<vmem>>, vector<8x36xbf16>
    %c0_1 = arith.constant 0 : index
    %c0_2 = arith.constant 0 : index
    %1 = vector.load %arg1[%c0_1, %c0_2] : memref<36x256xbf16, #tpu.memory_space<vmem>>, vector<36x256xbf16>
    %cst = arith.constant dense<0.000000e+00> : vector<8x256xf32>
    %2 = tpu.matmul %0, %1, %cst {dimension_numbers = #tpu.dot_dimension_numbers<[1], [0], [0], [1], [0, 0, 1, 1], [], []>} : vector<8x36xbf16>, vector<36x256xbf16>, vector<8x256xf32> -> vector<8x256xf32>
    %c0_3 = arith.constant 0 : index
    %c0_4 = arith.constant 0 : index
    %3 = vector.load %arg3[%c0_3, %c0_4] : memref<1x256xf32, #tpu.memory_space<vmem>>, vector<1x256xf32>
    %cst_5 = arith.constant 0.000000e+00 : f32
    %4 = vector.broadcast %cst_5 : f32 to vector<1x256xf32>
    %5 = arith.cmpf one, %3, %4 : vector<1x256xf32>
    %6 = tpu.reciprocal %3 : vector<1x256xf32> -> vector<1x256xf32>
    %cst_6 = arith.constant 0.000000e+00 : f32
    %7 = vector.broadcast %cst_6 : f32 to vector<1x256xf32>
    %8 = arith.select %5, %6, %7 : vector<1x256xi1>, vector<1x256xf32>
    %9 = vector.broadcast %8 : vector<1x256xf32> to vector<8x256xf32>
    %10 = arith.mulf %2, %9 : vector<8x256xf32>
    %c0_7 = arith.constant 0 : index
    %c0_8 = arith.constant 0 : index
    %11 = vector.load %arg4[%c0_7, %c0_8] : memref<8x1xf32, #tpu.memory_space<vmem>>, vector<8x1xf32>
    %12 = vector.broadcast %11 : vector<8x1xf32> to vector<8x256xf32>
    %13 = arith.addf %10, %12 : vector<8x256xf32>
    %cst_9 = arith.constant 0.000000e+00 : f32
    %14 = vector.shape_cast %5 : vector<1x256xi1> to vector<1x256xi1>
    %15 = vector.broadcast %14 : vector<1x256xi1> to vector<8x256xi1>
    %16 = vector.broadcast %cst_9 : f32 to vector<8x256xf32>
    %17 = arith.select %15, %13, %16 : vector<8x256xi1>, vector<8x256xf32>
    %c0_10 = arith.constant 0 : index
    %c0_11 = arith.constant 0 : index
    %18 = vector.load %arg5[%c0_10, %c0_11] : memref<8x256xf32, #tpu.memory_space<vmem>>, vector<8x256xf32>
    tpu.vector_store %arg5[%c0_10, %c0_11], %17 {strides = array<i32>} : memref<8x256xf32, #tpu.memory_space<vmem>>, vector<8x256xf32>,
    %19 = arith.extui %5 : vector<1x256xi1> to vector<1x256xi32>
    %20 = arith.sitofp %19 : vector<1x256xi32> to vector<1x256xf32>
    %c0_12 = arith.constant 0 : index
    %c0_13 = arith.constant 0 : index
    %21 = vector.load %arg6[%c0_12, %c0_13] : memref<1x256xf32, #tpu.memory_space<vmem>>, vector<1x256xf32>
    tpu.vector_store %arg6[%c0_12, %c0_13], %20 {strides = array<i32>} : memref<1x256xf32, #tpu.memory_space<vmem>>, vector<1x256xf32>,
    return
  }
  func.func @transform_0(%arg0: i32) -> (i32, i32) {
    %c0_i32 = arith.constant 0 : i32
    %c0_i32_0 = arith.constant 0 : i32
    return %c0_i32, %arg0 : i32, i32
  }
  func.func @transform_1(%arg0: i32) -> (i32, i32) {
    %c0_i32 = arith.constant 0 : i32
    %c0_i32_0 = arith.constant 0 : i32
    %c0_i32_1 = arith.constant 0 : i32
    return %c0_i32, %c0_i32_0 : i32, i32
  }
  func.func @transform_2(%arg0: i32) -> (i32, i32) {
    %c0_i32 = arith.constant 0 : i32
    %c0_i32_0 = arith.constant 0 : i32
    return %c0_i32, %arg0 : i32, i32
  }
  func.func @transform_3(%arg0: i32) -> (i32, i32) {
    %c0_i32 = arith.constant 0 : i32
    %c0_i32_0 = arith.constant 0 : i32
    %c0_i32_1 = arith.constant 0 : i32
    return %c0_i32, %c0_i32_0 : i32, i32
  }
  func.func @transform_4(%arg0: i32) -> (i32, i32) {
    %c0_i32 = arith.constant 0 : i32
    %c0_i32_0 = arith.constant 0 : i32
    return %c0_i32, %arg0 : i32, i32
  }
  func.func @transform_5(%arg0: i32) -> (i32, i32) {
    %c0_i32 = arith.constant 0 : i32
    %c0_i32_0 = arith.constant 0 : i32
    return %c0_i32, %arg0 : i32, i32
  }
}

</mosaic_0001>

<llo_original>
// kernel: tpu_custom_call.1
$region0: #{tpu_custom_call.1}
  #allocation0 [shape = 'u32[]', space=smem, size = 0x4, offset = 0x4, fixed_abs, tag = 'smem constant byte address 0x4 - core index']
  #allocation1 [shape = 'u32[144,128]{1,0:T(1,128)}', space=vmem, size = 0x12000, scoped, tag = 'internal scratch']
  %s0 = inlined_call_operand.hbm [shape: bf16[36,512], index: 0, kind: input, shape index: {}]
  %s1 = inlined_call_operand.vmem [shape: bf16[8,36], index: 1, kind: input, shape index: {}]
  %s2 = inlined_call_operand.vmem [shape: f32[1,512], index: 2, kind: input, shape index: {}]
  %s3 = inlined_call_operand.vmem [shape: f32[8,1], index: 3, kind: input, shape index: {}]
  %s4 = inlined_call_operand.hbm [shape: f32[8,512], index: 4, kind: output, shape index: {0}]
  %s5 = inlined_call_operand.hbm [shape: f32[1,512], index: 5, kind: output, shape index: {1}]
  %6 = xla_tuple %s4, %s5
  %s7 = sld [smem:[#allocation0]]
  $region61: #{tpu_custom_call.1} parent=0
    _
  %s9 = ssub.s32 1, %s7
  %s10 = scalar_select 0, %s9, %s7
  $region1: #{tpu_custom_call.1} parent=0
    #allocation2 [shape = 'u8[40960]{0}', space=vmem, size = 0xa000, scoped, tag = 'input window, operand 0']
    #allocation3 [shape = 's32[2]{0}', space=sflag, size = 0x8, scoped, tag = 'scoped memory for tpu_custom_call.1']
    #allocation4 [shape = 's32[2]{0}', space=sflag, size = 0x8, scoped, tag = 'scoped memory for tpu_custom_call.1']
    #allocation5 [shape = 'u8[16384]{0}', space=vmem, size = 0x4000, scoped, tag = 'output window, operand 0']
    #allocation6 [shape = 'u8[2048]{0}', space=vmem, size = 0x800, scoped, tag = 'output window, operand 1']
    #allocation7 [shape = 's32[2]{0}', space=sflag, size = 0x8, scoped, tag = 'scoped memory for tpu_custom_call.1']
    %11 = vsyncpa [#allocation3], 0
    %s12 = scalar_lea.sflag [#allocation3], 1
    %13 = vsyncpa %s12, 0
    %14 = vsyncpa [#allocation4], 0
    %s15 = scalar_lea.sflag [#allocation4], 1
    %16 = vsyncpa %s15, 0
    %17 = vsyncpa [#allocation7], 0
    %s18 = scalar_lea.sflag [#allocation7], 1
    %19 = vsyncpa %s18, 0
    loop: start=0, step=1, limit=4
    $region2: #{tpu_custom_call.1} parent=1 // loop_pre_header
      _
    $region3: #{tpu_custom_call.1} parent=1 // loop_header
      %s21 = sphi 0, %s25
      %p22 = scmp.ge.s32.totalorder %s21, 4
      %s31 = sphi 0, %s33
      %s34 = sphi 0, %s31
      %s35 = sphi 0, %s34
      %s51 = sphi 0, %s35
      %s55 = sphi 0, %s55
      %s57 = sphi 0, %s55
      %s58 = sphi 0, %s57
      %s72 = sphi 0, %s58
      %s78 = sphi 0, %s80
      %s81 = sphi 0, %s78
      %s82 = sphi 0, %s81
      %s98 = sphi 0, %s82
      %s102 = sphi 0, %s102
      %s104 = sphi 0, %s102
      %s105 = sphi 0, %s104
      %s119 = sphi 0, %s105
      %s125 = sphi 0, %s127
      %s128 = sphi 0, %s125
      %s129 = sphi 0, %s128
      %s145 = sphi 0, %s129
      %s151 = sphi 0, %s153
      %s154 = sphi 0, %s151
      %s155 = sphi 0, %s154
      %s171 = sphi 0, %s155
    $region4: #{tpu_custom_call.1} parent=1 // loop_header_branch
      %24 = sbr.rel (%p22) target = $region8
    $region5: #{tpu_custom_call.1} parent=1 // loop_body
      %s26 = ssub.s32 %s21, 1
      %s27 = ssub.s32 %s21, 2
      %s28 = sadd.s32 %s21, 1
      %s29 = ssub.s32 %s21, %s28
      %p30 = scmp.eq.s32.totalorder %s29, 0
      %s32 = sadd.s32 %s31, 1
      %s33 = scalar_select %p30, %s31, %s32
      %p36 = pneg %p30
      %p37 = scmp.eq.s32.totalorder %s21, 1
      %p38 = por %p36, %p37
      %p39 = scmp.ne.s32.totalorder %s31, %s34
      %p40 = scmp.eq.s32.totalorder %s21, 0
      %p41 = por %p39, %p40
      %p42 = scmp.ne.s32.totalorder %s31, %s34
      %p43 = scmp.eq.s32.totalorder %s26, 1
      %p44 = por %p42, %p43
      %p45 = scmp.ne.s32.totalorder %s34, %s35
      %p46 = scmp.eq.s32.totalorder %s26, 0
      %p47 = por %p45, %p46
      %p48 = scmp.ne.s32.totalorder %s34, %s35
      %p49 = scmp.eq.s32.totalorder %s27, 1
      %p50 = por %p48, %p49
      %p52 = scmp.ne.s32.totalorder %s35, %s51
      %p53 = scmp.eq.s32.totalorder %s27, 0
      %p54 = por %p52, %p53
      %s56 = sadd.s32 %s55, 1
      %p59 = scmp.eq.s32.totalorder %s21, 1
      %p60 = scmp.ne.s32.totalorder %s55, %s57
      %p61 = scmp.eq.s32.totalorder %s21, 0
      %p62 = por %p60, %p61
      %p63 = scmp.ne.s32.totalorder %s55, %s57
      %p64 = scmp.eq.s32.totalorder %s26, 1
      %p65 = por %p63, %p64
      %p66 = scmp.ne.s32.totalorder %s57, %s58
      %p67 = scmp.eq.s32.totalorder %s26, 0
      %p68 = por %p66, %p67
      %p69 = scmp.ne.s32.totalorder %s57, %s58
      %p70 = scmp.eq.s32.totalorder %s27, 1
      %p71 = por %p69, %p70
      %p73 = scmp.ne.s32.totalorder %s58, %s72
      %p74 = scmp.eq.s32.totalorder %s27, 0
      %p75 = por %p73, %p74
      %s76 = ssub.s32 %s21, %s28
      %p77 = scmp.eq.s32.totalorder %s76, 0
      %s79 = sadd.s32 %s78, 1
      %s80 = scalar_select %p77, %s78, %s79
      %p83 = pneg %p77
      %p84 = scmp.eq.s32.totalorder %s21, 1
      %p85 = por %p83, %p84
      %p86 = scmp.ne.s32.totalorder %s78, %s81
      %p87 = scmp.eq.s32.totalorder %s21, 0
      %p88 = por %p86, %p87
      %p89 = scmp.ne.s32.totalorder %s78, %s81
      %p90 = scmp.eq.s32.totalorder %s26, 1
      %p91 = por %p89, %p90
      %p92 = scmp.ne.s32.totalorder %s81, %s82
      %p93 = scmp.eq.s32.totalorder %s26, 0
      %p94 = por %p92, %p93
      %p95 = scmp.ne.s32.totalorder %s81, %s82
      %p96 = scmp.eq.s32.totalorder %s27, 1
      %p97 = por %p95, %p96
      %p99 = scmp.ne.s32.totalorder %s82, %s98
      %p100 = scmp.eq.s32.totalorder %s27, 0
      %p101 = por %p99, %p100
      %s103 = sadd.s32 %s102, 1
      %p106 = scmp.eq.s32.totalorder %s21, 1
      %p107 = scmp.ne.s32.totalorder %s102, %s104
      %p108 = scmp.eq.s32.totalorder %s21, 0
      %p109 = por %p107, %p108
      %p110 = scmp.ne.s32.totalorder %s102, %s104
      %p111 = scmp.eq.s32.totalorder %s26, 1
      %p112 = por %p110, %p111
      %p113 = scmp.ne.s32.totalorder %s104, %s105
      %p114 = scmp.eq.s32.totalorder %s26, 0
      %p115 = por %p113, %p114
      %p116 = scmp.ne.s32.totalorder %s104, %s105
      %p117 = scmp.eq.s32.totalorder %s27, 1
      %p118 = por %p116, %p117
      %p120 = scmp.ne.s32.totalorder %s105, %s119
      %p121 = scmp.eq.s32.totalorder %s27, 0
      %p122 = por %p120, %p121
      %s123 = ssub.s32 %s21, %s28
      %p124 = scmp.eq.s32.totalorder %s123, 0
      %s126 = sadd.s32 %s125, 1
      %s127 = scalar_select %p124, %s125, %s126
      %p130 = pneg %p124
      %p131 = scmp.eq.s32.totalorder %s21, 1
      %p132 = por %p130, %p131
      %p133 = scmp.ne.s32.totalorder %s125, %s128
      %p134 = scmp.eq.s32.totalorder %s21, 0
      %p135 = por %p133, %p134
      %p136 = scmp.ne.s32.totalorder %s125, %s128
      %p137 = scmp.eq.s32.totalorder %s26, 1
      %p138 = por %p136, %p137
      %p139 = scmp.ne.s32.totalorder %s128, %s129
      %p140 = scmp.eq.s32.totalorder %s26, 0
      %p141 = por %p139, %p140
      %p142 = scmp.ne.s32.totalorder %s128, %s129
      %p143 = scmp.eq.s32.totalorder %s27, 1
      %p144 = por %p142, %p143
      %p146 = scmp.ne.s32.totalorder %s129, %s145
      %p147 = scmp.eq.s32.totalorder %s27, 0
      %p148 = por %p146, %p147
      %s149 = ssub.s32 %s21, %s28
      %p150 = scmp.eq.s32.totalorder %s149, 0
      %s152 = sadd.s32 %s151, 1
      %s153 = scalar_select %p150, %s151, %s152
      %p156 = pneg %p150
      %p157 = scmp.eq.s32.totalorder %s21, 1
      %p158 = por %p156, %p157
      %p159 = scmp.ne.s32.totalorder %s151, %s154
      %p160 = scmp.eq.s32.totalorder %s21, 0
      %p161 = por %p159, %p160
      %p162 = scmp.ne.s32.totalorder %s151, %s154
      %p163 = scmp.eq.s32.totalorder %s26, 1
      %p164 = por %p162, %p163
      %p165 = scmp.ne.s32.totalorder %s154, %s155
      %p166 = scmp.eq.s32.totalorder %s26, 0
      %p167 = por %p165, %p166
      %p168 = scmp.ne.s32.totalorder %s154, %s155
      %p169 = scmp.eq.s32.totalorder %s27, 1
      %p170 = por %p168, %p169
      %p172 = scmp.ne.s32.totalorder %s155, %s171
      %p173 = scmp.eq.s32.totalorder %s27, 0
      %p174 = por %p172, %p173
      %p175 = scmp.le.s32.totalorder 1, %s21
      %p176 = scmp.lt.s32.totalorder %s21, 3
      %p177 = pnand %p175, %p176
      %p178 = pneg %p177
      // Predicated region
      $region9: #{tpu_custom_call.1} parent=5 // pred_check
        _
      $region10: #{tpu_custom_call.1} parent=5 // pred_check_branch
        %180 = sbr.rel (%p177) target = $region12
      $region11: #{tpu_custom_call.1} parent=5 // pred_region
        %s181 = ssub.s32 %s21, 1
        // Predicated region
        $region13: #{tpu_custom_call.1} parent=11 // pred_check
          %p182 = pneg %p68
        $region14: #{tpu_custom_call.1} parent=11 // pred_check_branch
          %184 = sbr.rel (%p182) target = $region16
        $region15: #{tpu_custom_call.1} parent=11 // pred_region
          _
        $region16: #{tpu_custom_call.1} parent=11 // pred_fallthru
          _
        // Predicated region
        $region17: #{tpu_custom_call.1} parent=11 // pred_check
          %p185 = pneg %p115
        $region18: #{tpu_custom_call.1} parent=11 // pred_check_branch
          %187 = sbr.rel (%p185) target = $region20
        $region19: #{tpu_custom_call.1} parent=11 // pred_region
          _
        $region20: #{tpu_custom_call.1} parent=11 // pred_fallthru
          _
      $region12: #{tpu_custom_call.1} parent=5 // pred_fallthru
        _
      %p188 = scmp.lt.s32.totalorder %s21, 2
      // Predicated region
      $region21: #{tpu_custom_call.1} parent=5 // pred_check
        %p189 = pneg %p188
      $region22: #{tpu_custom_call.1} parent=5 // pred_check_branch
        %191 = sbr.rel (%p189) target = $region24
      $region23: #{tpu_custom_call.1} parent=5 // pred_region
        // Predicated region
        $region25: #{tpu_custom_call.1} parent=23 // pred_check
          %p192 = pneg %p41
        $region26: #{tpu_custom_call.1} parent=23 // pred_check_branch
          %194 = sbr.rel (%p192) target = $region28
        $region27: #{tpu_custom_call.1} parent=23 // pred_region
          %s195 = sand.u32 %s31, 1
          %s196 = scalar_lea.sflag [#allocation3], %s195
          %s197 = sand.u32 %s31, 1
          %s198 = smul.addr %s197, 40
          %s199 = scalar_lea.vmem [#allocation2], %s198
          %s200 = smul.u32 2, %s21
          %s202 = ssub.s32 640, 640
          %203 = vsyncadd %s196, %s202
          %s204 = smul.addr %s200, 64
          %s205 = scalar_lea.hbm %s0, %s204
          %s206 = sshll.u32 %s199, 4
          %s207 = int_to_ptr.vmem [resolvable:$true] %s206
          %212 = dma.hbm_to_vmem [thread:$0]  %s205, 640, %s207, %s196, 256, 128, 8
        $region28: #{tpu_custom_call.1} parent=23 // pred_fallthru
          _
        // Predicated region
        $region29: #{tpu_custom_call.1} parent=23 // pred_check
          %p213 = pneg %p88
        $region30: #{tpu_custom_call.1} parent=23 // pred_check_branch
          %215 = sbr.rel (%p213) target = $region32
        $region31: #{tpu_custom_call.1} parent=23 // pred_region
          %s216 = smul.u32 2, %s21
          %p217 = scmp.lt.s32.totalorder %s216, 3
          %s218 = scalar_select %p217, %s216, 3
          %s219 = scalar_lea.vmem %s2, %s218
          %s220 = smul.u32 2, %s21
        $region32: #{tpu_custom_call.1} parent=23 // pred_fallthru
          _
      $region24: #{tpu_custom_call.1} parent=5 // pred_fallthru
        _
      %p221 = scmp.le.s32.totalorder 1, %s21
      %p222 = scmp.lt.s32.totalorder %s21, 3
      %p223 = pnand %p221, %p222
      %p224 = pneg %p223
      // Predicated region
      $region33: #{tpu_custom_call.1} parent=5 // pred_check
        _
      $region34: #{tpu_custom_call.1} parent=5 // pred_check_branch
        %226 = sbr.rel (%p223) target = $region36
      $region35: #{tpu_custom_call.1} parent=5 // pred_region
        %s227 = ssub.s32 %s21, 1
        %s228 = sand.u32 %s34, 1
        %s229 = scalar_lea.sflag [#allocation3], %s228
        %s230 = sand.u32 %s34, 1
        %s231 = smul.addr %s230, 40
        %s232 = scalar_lea.vmem [#allocation2], %s231
        // Predicated region
        $region37: #{tpu_custom_call.1} parent=35 // pred_check
          %p233 = pneg %p47
        $region38: #{tpu_custom_call.1} parent=35 // pred_check_branch
          %235 = sbr.rel (%p233) target = $region40
        $region39: #{tpu_custom_call.1} parent=35 // pred_region
          %236 = dma.done %s229, 640
        $region40: #{tpu_custom_call.1} parent=35 // pred_fallthru
          _
        %s237 = sand.u32 %s34, 1
        %s238 = scalar_lea.sflag [#allocation3], %s237
        %s239 = sand.u32 %s34, 1
        %s240 = smul.addr %s239, 40
        %s241 = scalar_lea.vmem [#allocation2], %s240
        %p242 = pneg %p47
        %p243 = pneg %p44
        %p244 = pneg %p68
        %p245 = pneg %p65
        %s246 = smul.u32 2, %s26
        %p247 = scmp.lt.s32.totalorder %s246, 3
        %s248 = scalar_select %p247, %s246, 3
        %s249 = scalar_lea.vmem %s2, %s248
        %p250 = pneg %p94
        %p251 = pneg %p91
        %p252 = pneg %p115
        %p253 = pneg %p112
        %p254 = pneg %p141
        %p255 = pneg %p138
        %s256 = sand.u32 %s128, 1
        %s257 = scalar_lea.sflag [#allocation4], %s256
        %s258 = sand.u32 %s128, 1
        %s259 = smul.addr %s258, 16
        %s260 = scalar_lea.vmem [#allocation5], %s259
        %p261 = pneg %p167
        %p262 = pneg %p164
        %s263 = sand.u32 %s154, 1
        %s264 = scalar_lea.sflag [#allocation7], %s263
        %s265 = sand.u32 %s154, 1
        %s266 = smul.addr %s265, 2
        %s267 = scalar_lea.vmem [#allocation6], %s266
        %s268 = smul.u32 2, %s26
        %s269 = smul.u32 2, %s26
        %p270 = scmp.lt.s32.totalorder %s269, 3
        %s271 = scalar_select %p270, %s269, 3
        %s272 = scalar_lea.vmem %s2, %s271
        %s273 = smul.u32 2, %s26
        %s274 = smul.u32 2, %s26
        %s275 = smul.u32 2, %s26
        %v277 = vld [vmem:[%s1] sm:$0xf]
        %v278 = vld [vmem:[%s232] sm:$0xff]
        %v279 = vld [vmem:[%s232 + $0x8] sm:$0xff]
        %v280 = vld [vmem:[%s232 + $0x10] sm:$0xff]
        %v281 = vld [vmem:[%s232 + $0x18] sm:$0xff]
        %v282 = vld [vmem:[%s232 + $0x20] sm:$0x33]
        %v288 = vunpack.c.l.b16 %v278
        %v289 = vunpack.c.h.b16 %v278
        %v290 = vunpack.c.l.b16 %v279
        %v291 = vunpack.c.h.b16 %v279
        %v292 = vunpack.c.l.b16 %v280
        %v293 = vunpack.c.h.b16 %v280
        %v294 = vunpack.c.l.b16 %v281
        %v295 = vunpack.c.h.b16 %v281
        %v296 = vunpack.c.l.b16 %v282
        %v297 = vunpack.c.h.b16 %v282
        %v298 = vpack.c.b16 %v290, %v288
        %v299 = vpack.c.b16 %v291, %v289
        %v300 = vpack.c.b16 %v294, %v292
        %v301 = vpack.c.b16 %v295, %v293
        %v302 = vpack.c.b16 %v296, %v296
        %v303 = vpack.c.b16 %v297, %v297
        %vm308 = vcmask 293888
        %v310 = vsel %vm308, %v277, 0
        %vm312 = vcmask 1041408
        %v314 = vsel %vm312, %v302, 0
        %v317 = vsel %vm312, %v303, 0
        %319 = vmatprep.subr.bf16.mxu0 %v299
        %320 = vmatpush1.bf16.msra.mxu0 %v298
        %321 = vmatprep.subr.bf16.mxu0 %v301
        %322 = vmatpush1.bf16.msra.mxu0 %v300
        %323 = vmatprep.subr.bf16.mxu0 %v317
        %324 = vmatpush1.bf16.msra.mxu0 %v314
        %325 = vmatprep.subr.bf16.mxu0 0
        %326 = vmatpush1.bf16.msra.mxu0 0
        %327 = vmatprep.subr.bf16.mxu0 0
        %328 = vmatpush1.bf16.msra.mxu0 0
        %329 = vmatprep.subr.bf16.mxu0 0
        %330 = vmatpush1.bf16.msra.mxu0 0
        %331 = vmatprep.subr.bf16.mxu0 0
        %332 = vmatpush1.bf16.msra.mxu0 0
        %333 = vmatprep.subr.bf16.mxu0 0
        %334 = vmatpush1.bf16.msra.mxu0 0
        %335 = vmatprep.subr.bf16.mxu0 0
        %336 = vmatpush1.bf16.msra.mxu0 0
        %337 = vmatprep.subr.bf16.mxu0 0
        %338 = vmatpush1.bf16.msra.mxu0 0
        %339 = vmatprep.subr.bf16.mxu0 0
        %340 = vmatpush1.bf16.msra.mxu0 0
        %341 = vmatprep.subr.bf16.mxu0 0
        %342 = vmatpush1.bf16.msra.mxu0 0
        %343 = vmatprep.subr.bf16.mxu0 0
        %344 = vmatpush1.bf16.msra.mxu0 0
        %345 = vmatprep.subr.bf16.mxu0 0
        %346 = vmatpush1.bf16.msra.mxu0 0
        %347 = vmatprep.subr.bf16.mxu0 0
        %348 = vmatpush1.bf16.msra.mxu0 0
        %349 = vmatprep.subr.bf16.mxu0 0
        %350 = vmatpush1.bf16.msra.mxu0 0
        %351 = vmatprep.mubr.bf16.mxu0 0
        %352 = vmatmul.mubr.bf16.gmra.mrb[0].mxu0 %v310
        %v353 = vpop.f32.mrb[0].mxu0
        %v354 = vadd.f32 0.0, %v353
        %v355 = vpop.f32.mrb[0].mxu0
        %v356 = vadd.f32 0.0, %v355
        %v357 = vpop.f32.mrb[0].mxu0
        %v358 = vpop.f32.mrb[0].mxu0
        %359 = vdwg.mxu0
        %v360 = vld [vmem:[%s272] sm:$0x3]
        %vm361 = vcmp.ne.f32.partialorder %v360, 0.0
        %v362 = vrcp.pop %v360
        %v363 = vsel %vm361, %v362, 0.0
        %v365 = vlaneseq
        %v366 = vshrl.u32 %v365, 7
        %v367 = vsub.s32 0, %v366
        %v368 = vrot.slane %v363, %v367
        %v369 = vlaneseq
        %v370 = vshrl.u32 %v369, 7
        %v371 = vsub.s32 1, %v370
        %v372 = vrot.slane %v363, %v371
        %v375 = vmul.f32 %v354, %v368
        %v376 = vmul.f32 %v356, %v372
        %v377 = vld [vmem:[%s3] sm:$0xff]
        %379 = vset.pattern.permute.xlu0 0
        %380 = vperm.xlu0 %379, %v377
        %v381 = vpop.permute.xlu0 %380
        %v383 = vadd.f32 %v375, %v381
        %v384 = vadd.f32 %v376, %v381
        %v385 = vsel %vm361, 1, 0
        %v386 = vlaneseq
        %v387 = vshrl.u32 %v386, 7
        %v388 = vsub.s32 0, %v387
        %v389 = vrot.slane %v385, %v388
        %v390 = vlaneseq
        %v391 = vshrl.u32 %v390, 7
        %v392 = vsub.s32 1, %v391
        %v393 = vrot.slane %v385, %v392
        %vm394 = vcmp.eq.s32.totalorder %v389, 1
        %vm395 = vcmp.eq.s32.totalorder %v393, 1
        %v396 = vsel %vm394, %v383, 0.0
        %v397 = vsel %vm395, %v384, 0.0
        %398 = vst [vmem:[%s260] sm:$0xff] %v396
        %399 = vst [vmem:[%s260 + $0x8] sm:$0xff] %v397
        %v400 = vcvt.s32.f32 %v385
        %v401 = vlaneseq
        %vm402 = vcmp.ge.s32.totalorder %v401, 0
        %vm403 = vcmp.lt.s32.totalorder %v401, 256
        %vm404 = vmand %vm402, %vm403
        %405 = vst.msk [vmem:[%s267] sm:$0x3] %vm404, %v400
        %s406 = sand.u32 %s128, 1
        %s407 = scalar_lea.sflag [#allocation4], %s406
        %s408 = sand.u32 %s128, 1
        %s409 = smul.addr %s408, 16
        %s410 = scalar_lea.vmem [#allocation5], %s409
        %s411 = sand.u32 %s154, 1
        %s412 = scalar_lea.sflag [#allocation7], %s411
        %s413 = sand.u32 %s154, 1
        %s414 = smul.addr %s413, 2
        %s415 = scalar_lea.vmem [#allocation6], %s414
        // Predicated region
        $region41: #{tpu_custom_call.1} parent=35 // pred_check
          %p416 = pneg %p138
        $region42: #{tpu_custom_call.1} parent=35 // pred_check_branch
          %418 = sbr.rel (%p416) target = $region44
        $region43: #{tpu_custom_call.1} parent=35 // pred_region
          %s419 = smul.u32 2, %s26
          %s421 = ssub.s32 256, 256
          %422 = vsyncadd %s407, %s421
          %s423 = smul.addr %s419, 128
          %s424 = scalar_lea.hbm %s4, %s423
          %s426 = sshll.u32 %s410, 4
          %s427 = int_to_ptr.vmem [resolvable:$true] %s426
          %429 = dma.vmem_to_hbm [thread:$0]  %s427, 256, %s424, %s407
        $region44: #{tpu_custom_call.1} parent=35 // pred_fallthru
          _
        // Predicated region
        $region45: #{tpu_custom_call.1} parent=35 // pred_check
          %p430 = pneg %p164
        $region46: #{tpu_custom_call.1} parent=35 // pred_check_branch
          %432 = sbr.rel (%p430) target = $region48
        $region47: #{tpu_custom_call.1} parent=35 // pred_region
          %s433 = smul.u32 2, %s26
          %s435 = ssub.s32 32, 32
          %436 = vsyncadd %s412, %s435
          %s437 = smul.addr %s433, 16
          %s438 = scalar_lea.hbm %s5, %s437
          %s440 = sshll.u32 %s415, 4
          %s441 = int_to_ptr.vmem [resolvable:$true] %s440
          %443 = dma.vmem_to_hbm [thread:$0]  %s441, 32, %s438, %s412
        $region48: #{tpu_custom_call.1} parent=35 // pred_fallthru
          _
      $region36: #{tpu_custom_call.1} parent=5 // pred_fallthru
        _
      %p444 = scmp.le.s32.totalorder 2, %s21
      // Predicated region
      $region49: #{tpu_custom_call.1} parent=5 // pred_check
        %p445 = pneg %p444
      $region50: #{tpu_custom_call.1} parent=5 // pred_check_branch
        %447 = sbr.rel (%p445) target = $region52
      $region51: #{tpu_custom_call.1} parent=5 // pred_region
        %s448 = ssub.s32 %s21, 2
        // Predicated region
        $region53: #{tpu_custom_call.1} parent=51 // pred_check
          %p449 = pneg %p144
        $region54: #{tpu_custom_call.1} parent=51 // pred_check_branch
          %451 = sbr.rel (%p449) target = $region56
        $region55: #{tpu_custom_call.1} parent=51 // pred_region
          %s452 = sand.u32 %s129, 1
          %s453 = scalar_lea.sflag [#allocation4], %s452
          %s454 = sand.u32 %s129, 1
          %s455 = smul.addr %s454, 16
          %s456 = scalar_lea.vmem [#allocation5], %s455
          %457 = dma.done %s453, 256
        $region56: #{tpu_custom_call.1} parent=51 // pred_fallthru
          _
        // Predicated region
        $region57: #{tpu_custom_call.1} parent=51 // pred_check
          %p458 = pneg %p170
        $region58: #{tpu_custom_call.1} parent=51 // pred_check_branch
          %460 = sbr.rel (%p458) target = $region60
        $region59: #{tpu_custom_call.1} parent=51 // pred_region
          %s461 = sand.u32 %s155, 1
          %s462 = scalar_lea.sflag [#allocation7], %s461
          %s463 = sand.u32 %s155, 1
          %s464 = smul.addr %s463, 2
          %s465 = scalar_lea.vmem [#allocation6], %s464
          %466 = dma.done %s462, 32
        $region60: #{tpu_custom_call.1} parent=51 // pred_fallthru
          _
      $region52: #{tpu_custom_call.1} parent=5 // pred_fallthru
        _
    $region6: #{tpu_custom_call.1} parent=1 // loop_footer
      %s25 = sadd.s32 1, %s21
    $region7: #{tpu_custom_call.1} parent=1 // loop_footer_branch
      %20 = sbr.rel target = $region3
    $region8: #{tpu_custom_call.1} parent=1 // loop_exit
      _
    %467 = vsyncpa [#allocation3], 1
    %s468 = scalar_lea.sflag [#allocation3], 1
    %469 = vsyncpa %s468, 1
    %470 = vsyncpa [#allocation4], 1
    %s471 = scalar_lea.sflag [#allocation4], 1
    %472 = vsyncpa %s471, 1
    %473 = vsyncpa [#allocation7], 1
    %s474 = scalar_lea.sflag [#allocation7], 1
    %475 = vsyncpa %s474, 1

</llo_original>
